<compile_context>
chip_gen: v5e
topology: v5e:2x2
jax: 0.10.0
libtpu: 0.0.40
codegen_flags: <defaults>
</compile_context>

<pallas_src>
import functools

import jax
import jax.numpy as jnp
from jax import lax
from jax.experimental import pallas as pl
from jax.experimental.pallas import tpu as pltpu

_VMEM_LIMIT = 32 * 1024 * 1024        # fits every gen (v7x has 64 MiB physical)
_STREAM_BUDGET = 12 * 1024 * 1024     # budget for per-chunk streaming buffers


def _round_up(x, m):
    return (x + m - 1) // m * m


# ----------------------------------------------------------------------------
# Tiled matmul + bias kernel (hoisted LSTM input projections).
#   x:[M, K] @ w:[K, N] + b:[1, N] -> o:[M, N]   (bf16 MXU operands, f32 acc)
# ----------------------------------------------------------------------------
def _matmul_bias_kernel(x_ref, w_ref, b_ref, o_ref):
    acc = jnp.dot(x_ref[...], w_ref[...], preferred_element_type=jnp.float32)
    o_ref[...] = (acc + b_ref[...]).astype(o_ref.dtype)


def matmul_bias(x, w, b, *, tile_m=256, out_dtype=jnp.float32):
    M, K = x.shape
    N = w.shape[1]
    M8 = _round_up(M, 8)
    if M8 <= tile_m:
        tile_m, grid_m = M8, 1
    else:
        # pick a near-balanced tile so M_pad stays close to M (minimal waste)
        grid_m = pl.cdiv(M8, tile_m)
        tile_m = _round_up(pl.cdiv(M8, grid_m), 16)
        grid_m = pl.cdiv(M8, tile_m)
    M_pad = grid_m * tile_m
    if M_pad != M:
        x = jnp.pad(x, ((0, M_pad - M), (0, 0)))
    out = pl.pallas_call(
        _matmul_bias_kernel,
        grid=(grid_m,),
        out_shape=jax.ShapeDtypeStruct((M_pad, N), out_dtype),
        in_specs=[
            pl.BlockSpec((tile_m, K), lambda i: (i, 0)),
            pl.BlockSpec((K, N), lambda i: (0, 0)),
            pl.BlockSpec((1, N), lambda i: (0, 0)),
        ],
        out_specs=pl.BlockSpec((tile_m, N), lambda i: (i, 0)),
        compiler_params=pltpu.CompilerParams(
            dimension_semantics=("parallel",),
            vmem_limit_bytes=_VMEM_LIMIT),
    )(x.astype(jnp.bfloat16), w.astype(jnp.bfloat16),
      b.reshape(1, N).astype(jnp.float32))
    return out[:M]


# ----------------------------------------------------------------------------
# Shared per-timestep LSTM cell step (register-carried h/c, bf16 h for MXU).
# ----------------------------------------------------------------------------
def _cell_step(xp_f32, inv, whh, carry):
    h, c, h_b = carry
    H = h.shape[1]
    gates = xp_f32 + inv + jnp.dot(h_b, whh, preferred_element_type=jnp.float32)
    i_g = jax.nn.sigmoid(gates[:, 0 * H:1 * H])
    f_g = jax.nn.sigmoid(gates[:, 1 * H:2 * H])
    g_g = jnp.tanh(gates[:, 2 * H:3 * H])
    o_g = jax.nn.sigmoid(gates[:, 3 * H:4 * H])
    c_new = f_g * c + i_g * g_g
    h_new = o_g * jnp.tanh(c_new)
    return h_new, c_new, h_new.astype(whh.dtype)


def _pick_t_chunk(T, per_t_bytes, t_chunk_max=64):
    cap = max(1, _STREAM_BUDGET // max(per_t_bytes, 1))
    t_chunk = max(1, min(t_chunk_max, cap, T))
    grid_t = pl.cdiv(T, t_chunk)
    t_chunk = pl.cdiv(T, grid_t)          # balance -> minimal T padding
    return t_chunk, grid_t


# ----------------------------------------------------------------------------
# Plain LSTM recurrence kernel (used by the semantic generator, outputs h).
#   xp:[T, N, 4H] bf16 (pre-projected x_t @ W_ih + b), inv:[N, 4H] f32.
# ----------------------------------------------------------------------------
def _lstm_kernel(xp_ref, inv_ref, whh_ref, out_ref, h_ref, c_ref, *, unroll):
    @pl.when(pl.program_id(0) == 0)
    def _():
        h_ref[...] = jnp.zeros_like(h_ref)
        c_ref[...] = jnp.zeros_like(c_ref)

    t_chunk = xp_ref.shape[0]
    inv = inv_ref[...]
    whh = whh_ref[...]

    def step(i, carry):
        carry = _cell_step(xp_ref[i].astype(jnp.float32), inv, whh, carry)
        out_ref[i] = carry[0].astype(out_ref.dtype)
        return carry

    h0 = h_ref[...]
    c0 = c_ref[...]
    h, c, _ = lax.fori_loop(0, t_chunk, step,
                            (h0, c0, h0.astype(whh.dtype)), unroll=unroll)
    h_ref[...] = h
    c_ref[...] = c


def lstm_forward(xp_tm, inv, w_hh, *, t_chunk_max=64):
    """xp_tm:[T, N, 4H] bf16, inv:[N, 4H] f32, w_hh:[H, 4H] -> y:[T, N, H] f32."""
    T, N, G = xp_tm.shape
    H = w_hh.shape[0]
    assert G == 4 * H and inv.shape == (N, G)
    per_t = N * (2 * G * 2 + 2 * H * 4)          # 2x bf16 xp + 2x f32 out buffers
    t_chunk, grid_t = _pick_t_chunk(T, per_t, t_chunk_max)
    T_pad = grid_t * t_chunk
    if T_pad != T:
        xp_tm = jnp.pad(xp_tm, ((0, T_pad - T), (0, 0), (0, 0)))
    kernel = functools.partial(_lstm_kernel, unroll=min(8, t_chunk))
    out = pl.pallas_call(
        kernel,
        grid=(grid_t,),
        out_shape=jax.ShapeDtypeStruct((T_pad, N, H), jnp.float32),
        in_specs=[
            pl.BlockSpec((t_chunk, N, G), lambda t: (t, 0, 0)),
            pl.BlockSpec((N, G), lambda t: (0, 0)),
            pl.BlockSpec((H, G), lambda t: (0, 0)),
        ],
        out_specs=pl.BlockSpec((t_chunk, N, H), lambda t: (t, 0, 0)),
        scratch_shapes=[
            pltpu.VMEM((N, H), jnp.float32),   # h
            pltpu.VMEM((N, H), jnp.float32),   # c
        ],
        compiler_params=pltpu.CompilerParams(
            dimension_semantics=("arbitrary",),      # sequential recurrence
            vmem_limit_bytes=_VMEM_LIMIT),
    )(xp_tm.astype(jnp.bfloat16), inv.astype(jnp.float32),
      w_hh.astype(jnp.bfloat16))
    return out[:T]


# ----------------------------------------------------------------------------
# Fused LSTM + length-mask + linear + log_softmax kernel (lyrics generator).
# Emits log-probs directly; hidden states never round-trip through HBM.
# ----------------------------------------------------------------------------
def _lstm_head_kernel(xp_ref, inv_ref, whh_ref, lens_ref, wlin_ref, blin_ref,
                      out_ref, h_ref, c_ref, hbuf_ref, *, unroll):
    @pl.when(pl.program_id(0) == 0)
    def _():
        h_ref[...] = jnp.zeros_like(h_ref)
        c_ref[...] = jnp.zeros_like(c_ref)

    t_chunk, N, H = hbuf_ref.shape
    inv = inv_ref[...]
    whh = whh_ref[...]

    def step(i, carry):
        carry = _cell_step(xp_ref[i].astype(jnp.float32), inv, whh, carry)
        hbuf_ref[i] = carry[0]
        return carry

    h0 = h_ref[...]
    c0 = c_ref[...]
    h, c, _ = lax.fori_loop(0, t_chunk, step,
                            (h0, c0, h0.astype(whh.dtype)), unroll=unroll)
    h_ref[...] = h
    c_ref[...] = c

    # Chunk epilogue: packed-sequence mask (t >= len -> zero hidden),
    # then linear + log_softmax over V_pad lanes (-1e30 bias on padded lanes).
    t0 = pl.program_id(0) * t_chunk
    t_idx = t0 + lax.broadcasted_iota(jnp.int32, (t_chunk, N, 1), 0)
    mask = (t_idx < lens_ref[...][None, :, :]).astype(jnp.float32)
    hm = hbuf_ref[...] * mask                                         # (t, N, H) f32
    V = wlin_ref.shape[1]
    z = (jnp.dot(hm.reshape(t_chunk * N, H).astype(wlin_ref.dtype), wlin_ref[...],
                 preferred_element_type=jnp.float32)
         + blin_ref[...])                                             # (t*N, V) f32
    m = jnp.max(z, axis=-1, keepdims=True)
    lse = jnp.log(jnp.sum(jnp.exp(z - m), axis=-1, keepdims=True))
    out_ref[...] = (z - m - lse).reshape(t_chunk, N, V).astype(out_ref.dtype)


def lstm_head_forward(xp_tm, inv, w_hh, lens, w_lin, b_lin, *, t_chunk_max=64):
    """xp_tm:[T,N,4H] bf16, inv:[N,4H] f32, lens:[N] int32 -> logp:[T,N,V_pad] f32."""
    T, N, G = xp_tm.shape
    H = w_hh.shape[0]
    V = w_lin.shape[1]
    V_pad = _round_up(V, 128)
    assert G == 4 * H and inv.shape == (N, G)
    w_lin_p = jnp.pad(w_lin.astype(jnp.bfloat16), ((0, 0), (0, V_pad - V)))
    b_lin_p = jnp.pad(b_lin.reshape(1, V).astype(jnp.float32),
                      ((0, 0), (0, V_pad - V)), constant_values=-1e30)
    per_t = N * (2 * G * 2 + H * 4 + 2 * V_pad * 4)   # 2x xp bf16, hbuf, 2x out
    t_chunk, grid_t = _pick_t_chunk(T, per_t, t_chunk_max)
    T_pad = grid_t * t_chunk
    if T_pad != T:
        xp_tm = jnp.pad(xp_tm, ((0, T_pad - T), (0, 0), (0, 0)))
    kernel = functools.partial(_lstm_head_kernel, unroll=min(8, t_chunk))
    out = pl.pallas_call(
        kernel,
        grid=(grid_t,),
        out_shape=jax.ShapeDtypeStruct((T_pad, N, V_pad), jnp.float32),
        in_specs=[
            pl.BlockSpec((t_chunk, N, G), lambda t: (t, 0, 0)),
            pl.BlockSpec((N, G), lambda t: (0, 0)),
            pl.BlockSpec((H, G), lambda t: (0, 0)),
            pl.BlockSpec((N, 1), lambda t: (0, 0)),
            pl.BlockSpec((H, V_pad), lambda t: (0, 0)),
            pl.BlockSpec((1, V_pad), lambda t: (0, 0)),
        ],
        out_specs=pl.BlockSpec((t_chunk, N, V_pad), lambda t: (t, 0, 0)),
        scratch_shapes=[
            pltpu.VMEM((N, H), jnp.float32),            # h
            pltpu.VMEM((N, H), jnp.float32),            # c
            pltpu.VMEM((t_chunk, N, H), jnp.float32),   # chunk hidden buffer
        ],
        compiler_params=pltpu.CompilerParams(
            dimension_semantics=("arbitrary",),
            vmem_limit_bytes=_VMEM_LIMIT),
    )(xp_tm.astype(jnp.bfloat16), inv.astype(jnp.float32),
      w_hh.astype(jnp.bfloat16), lens.reshape(N, 1).astype(jnp.int32),
      w_lin_p, b_lin_p)
    return out[:T, :, :V]


# ----------------------------------------------------------------------------
# Parameter init (deterministic; shapes match SemanticLyricsRNN.__init__).
# Matmul weights are stored bf16 once here (no per-call convert passes);
# biases stay f32.  b_S/b_L represent the fused PyTorch (b_ih + b_hh).
# ----------------------------------------------------------------------------
def init_params(key, cfg):
    ks = jax.random.split(key, 9)
    s = 0.1
    H_S, H_L = cfg["hidden_size_S"], cfg["hidden_size_L"]
    sem_in = cfg["noise_size"] + cfg["num_artists"]                  # one-hot artist
    lyr_in = cfg["word_embedding_size"] + H_S + cfg["melody_len"]
    word_emb = jax.random.normal(ks[0], (cfg["input_size"], cfg["word_embedding_size"])) * s
    word_emb = word_emb.at[cfg["pad_id"]].set(0.0)                   # padding_idx row = 0
    bf = jnp.bfloat16
    return dict(
        word_emb=word_emb.astype(bf),
        W_ih_S=(jax.random.normal(ks[1], (sem_in, 4 * H_S)) * s).astype(bf),
        W_hh_S=(jax.random.normal(ks[2], (H_S, 4 * H_S)) * s).astype(bf),
        b_S=jax.random.normal(ks[3], (4 * H_S,)) * s,
        W_ih_L=(jax.random.normal(ks[4], (lyr_in, 4 * H_L)) * s).astype(bf),
        W_hh_L=(jax.random.normal(ks[5], (H_L, 4 * H_L)) * s).astype(bf),
        b_L=jax.random.normal(ks[6], (4 * H_L,)) * s,
        W_lin=(jax.random.normal(ks[7], (H_L, cfg["output_size"])) * s).astype(bf),
        b_lin=jax.random.normal(ks[8], (cfg["output_size"],)) * s,
    )


# ----------------------------------------------------------------------------
# Full forward pass (== SemanticLyricsRNN.forward with use_artist=True,
# use_melody=True, use_noise=False, embed_artist=False; semantic_generator
# concatenates iteration noise with the one-hot artist embedding).
# ----------------------------------------------------------------------------
def semantic_lyrics_rnn_forward(params, cfg, tokens, input_lens, melody, artist, noise):
    B = cfg["batch_size"]
    NL = tokens.shape[0]            # batch_size * num_lines
    L = NL // B                     # num_lines
    H_S, H_L = cfg["hidden_size_S"], cfg["hidden_size_L"]
    E = cfg["word_embedding_size"]

    lens = jnp.asarray(input_lens, dtype=jnp.int32)
    # pad_packed pads only to max(lens); needs concrete Python lengths (no jit of lens).
    T_out = int(max(int(l) for l in input_lens))

    # ---- semantic generator: [noise | one-hot(artist)] -> semantic LSTM ----
    artist_oh = jax.nn.one_hot(artist, cfg["num_artists"], dtype=jnp.float32)      # (B, A)
    artist_oh = jnp.broadcast_to(artist_oh[:, None, :], (B, L, cfg["num_artists"]))
    sem_in = jnp.concatenate([noise.astype(jnp.float32), artist_oh], axis=2)        # (B, L, Z+A)
    D_S = sem_in.shape[-1]
    B_pad = _round_up(B, 8)                                                         # sublane-dense N
    sem_tm = jnp.transpose(sem_in, (1, 0, 2))                                       # (L, B, D) time-major
    sem_tm = jnp.pad(sem_tm, ((0, 0), (0, B_pad - B), (0, 0)))
    xp_s = matmul_bias(sem_tm.reshape(L * B_pad, D_S), params["W_ih_S"],
                       params["b_S"], out_dtype=jnp.bfloat16).reshape(L, B_pad, 4 * H_S)
    inv_s = jnp.zeros((B_pad, 4 * H_S), jnp.float32)
    sem_out = lstm_forward(xp_s, inv_s, params["W_hh_S"])                           # (L, B_pad, H_S)
    sem_reps = jnp.transpose(sem_out[:, :B, :], (1, 0, 2)).reshape(NL, H_S)         # (B*L, H_S)

    # ---- lyrics generator (fused LSTM + mask + linear + log_softmax) ----
    N_pad = _round_up(NL, 8)
    tokens_t = tokens[:, :T_out]
    # gather embeddings directly time-major from the bf16 table (no relayout pass)
    embed_tm = jnp.take(params["word_emb"], tokens_t.T, axis=0)                     # (T, NL, E) bf16
    embed_tm = jnp.pad(embed_tm, ((0, 0), (0, N_pad - NL), (0, 0)))
    # split W_ih_L by input segment: project time-varying (embed) over T*N rows,
    # and the time-invariant [sem_reps | melody] once per line (no T broadcast).
    W_emb = params["W_ih_L"][:E]                                                    # (E, 4H_L)
    W_inv = params["W_ih_L"][E:]                                                    # (H_S+MEL, 4H_L)
    xp_l = matmul_bias(embed_tm.reshape(T_out * N_pad, E), W_emb,
                       jnp.zeros((4 * H_L,), jnp.float32), out_dtype=jnp.bfloat16)
    xp_l = xp_l.reshape(T_out, N_pad, 4 * H_L)
    inv_in = jnp.concatenate([sem_reps, melody.astype(jnp.float32)], axis=1)        # (NL, H_S+MEL)
    inv_in = jnp.pad(inv_in, ((0, N_pad - NL), (0, 0)))
    inv_l = matmul_bias(inv_in, W_inv, params["b_L"])                               # (N_pad, 4H_L) f32
    lens_pad = jnp.pad(lens, (0, N_pad - NL))                                       # padded rows -> len 0

    # TODO(synk): nn.Dropout(p=0.5) in train mode is stochastic; eval-mode identity used here.
    logp_tm = lstm_head_forward(xp_l, inv_l, params["W_hh_L"], lens_pad,
                                params["W_lin"], params["b_lin"])                   # (T, N_pad, V)
    logp = jnp.transpose(logp_tm[:, :NL, :], (1, 0, 2))                             # (NL, T, V)
    return logp.reshape(B, L * T_out, cfg["output_size"])


if __name__ == "__main__":
    cfg = dict(
        input_size=60,          # vocab size
        output_size=60,
        pad_id=0,
        batch_size=2,
        noise_size=32,
        hidden_size_S=128,
        hidden_size_L=256,
        melody_len=40,
        word_embedding_size=128,
        num_artists=10,
    )
    num_lines = 2
    seq_len = 8

    key = jax.random.PRNGKey(0)
    kp, kt, km, ka, kn = jax.random.split(key, 5)
    params = init_params(kp, cfg)

    NL = cfg["batch_size"] * num_lines
    tokens = jax.random.randint(kt, (NL, seq_len), 1, cfg["input_size"])            # (B*L, T)
    input_lens = [8, 5, 7, 3]                                                       # per-line lengths
    melody = jax.random.normal(km, (NL, cfg["melody_len"]))                         # (B*L, melody_len)
    artist = jax.random.randint(ka, (cfg["batch_size"],), 0, cfg["num_artists"])    # (B,)
    noise = jax.random.normal(kn, (cfg["batch_size"], num_lines, cfg["noise_size"]))

    out = semantic_lyrics_rnn_forward(params, cfg, tokens, input_lens, melody, artist, noise)
    out = jax.block_until_ready(out)
    assert out.shape == (cfg["batch_size"], num_lines * max(input_lens), cfg["output_size"])
    assert bool(jnp.all(jnp.isfinite(out)))
    print("KERNEL_OK")
</pallas_src>

<mosaic_0001>
module attributes {stable_mosaic.version = 11 : i64} {
  func.func @_matmul_bias_kernel(%arg0: i32, %arg1: memref<16x42xbf16, #tpu.memory_space<vmem>>, %arg2: memref<42x512xbf16, #tpu.memory_space<vmem>>, %arg3: memref<1x512xf32, #tpu.memory_space<vmem>>, %arg4: memref<16x512xbf16, #tpu.memory_space<vmem>>) attributes {dimension_semantics = [#tpu.dimension_semantics<parallel>], iteration_bounds = array<i64: 1>, scalar_prefetch = 0 : i64, scratch_operands = 0 : i64, tpu.core_type = #tpu.core_type<tc>, window_params = [{transform_indices = @transform_0, window_bounds = array<i64: 16, 42>}, {pipeline_mode = #tpu.pipeline_mode<synchronous>, transform_indices = @transform_1, window_bounds = array<i64: 42, 512>}, {pipeline_mode = #tpu.pipeline_mode<synchronous>, transform_indices = @transform_2, window_bounds = array<i64: 1, 512>}, {transform_indices = @transform_3, window_bounds = array<i64: 16, 512>}]} {
    %c0 = arith.constant 0 : index
    %c0_0 = arith.constant 0 : index
    %0 = vector.load %arg1[%c0, %c0_0] : memref<16x42xbf16, #tpu.memory_space<vmem>>, vector<16x42xbf16>
    %c0_1 = arith.constant 0 : index
    %c0_2 = arith.constant 0 : index
    %1 = vector.load %arg2[%c0_1, %c0_2] : memref<42x512xbf16, #tpu.memory_space<vmem>>, vector<42x512xbf16>
    %cst = arith.constant dense<0.000000e+00> : vector<16x512xf32>
    %2 = tpu.matmul %0, %1, %cst {dimension_numbers = #tpu.dot_dimension_numbers<[1], [0], [0], [1], [0, 0, 1, 1], [], []>} : vector<16x42xbf16>, vector<42x512xbf16>, vector<16x512xf32> -> vector<16x512xf32>
    %c0_3 = arith.constant 0 : index
    %c0_4 = arith.constant 0 : index
    %3 = vector.load %arg3[%c0_3, %c0_4] : memref<1x512xf32, #tpu.memory_space<vmem>>, vector<1x512xf32>
    %4 = vector.broadcast %3 : vector<1x512xf32> to vector<16x512xf32>
    %5 = arith.addf %2, %4 : vector<16x512xf32>
    %6 = arith.truncf %5 : vector<16x512xf32> to vector<16x512xbf16>
    %c0_5 = arith.constant 0 : index
    %c0_6 = arith.constant 0 : index
    %7 = vector.load %arg4[%c0_5, %c0_6] : memref<16x512xbf16, #tpu.memory_space<vmem>>, vector<16x512xbf16>
    tpu.vector_store %arg4[%c0_5, %c0_6], %6 {strides = array<i32>} : memref<16x512xbf16, #tpu.memory_space<vmem>>, vector<16x512xbf16>,
    return
  }
  func.func @transform_0(%arg0: i32) -> (i32, i32) {
    %c0_i32 = arith.constant 0 : i32
    %c0_i32_0 = arith.constant 0 : i32
    return %arg0, %c0_i32 : i32, i32
  }
  func.func @transform_1(%arg0: i32) -> (i32, i32) {
    %c0_i32 = arith.constant 0 : i32
    %c0_i32_0 = arith.constant 0 : i32
    %c0_i32_1 = arith.constant 0 : i32
    return %c0_i32, %c0_i32_0 : i32, i32
  }
  func.func @transform_2(%arg0: i32) -> (i32, i32) {
    %c0_i32 = arith.constant 0 : i32
    %c0_i32_0 = arith.constant 0 : i32
    %c0_i32_1 = arith.constant 0 : i32
    return %c0_i32, %c0_i32_0 : i32, i32
  }
  func.func @transform_3(%arg0: i32) -> (i32, i32) {
    %c0_i32 = arith.constant 0 : i32
    %c0_i32_0 = arith.constant 0 : i32
    return %arg0, %c0_i32 : i32, i32
  }
}

</mosaic_0001>

<llo_original>
// kernel: tpu_custom_call.1
$region0: #{tpu_custom_call.1}
  #allocation0 [shape = 'u32[]', space=smem, size = 0x4, offset = 0x4, fixed_abs, tag = 'smem constant byte address 0x4 - core index']
  #allocation1 [shape = 'u32[72,128]{1,0:T(1,128)}', space=vmem, size = 0x9000, scoped, tag = 'internal scratch']
  %s0 = inlined_call_operand.hbm [shape: bf16[16,42], index: 0, kind: input, shape index: {}]
  %s1 = inlined_call_operand.hbm [shape: bf16[42,512], index: 1, kind: input, shape index: {}]
  %s2 = inlined_call_operand.hbm [shape: f32[1,512], index: 2, kind: input, shape index: {}]
  %s3 = inlined_call_operand.hbm [shape: bf16[16,512], index: 3, kind: output, shape index: {}]
  %s4 = sld [smem:[#allocation0]]
  $region34: #{tpu_custom_call.1} parent=0
    _
  %s6 = ssub.s32 1, %s4
  %s7 = scalar_select 0, %s6, %s4
  $region1: #{tpu_custom_call.1} parent=0
    #allocation2 [shape = 'u8[4096]{0}', space=vmem, size = 0x1000, scoped, tag = 'input window, operand 0, single buffered']
    #allocation3 [shape = 's32[1]{0}', space=sflag, size = 0x4, scoped, tag = 'scoped memory for tpu_custom_call.1']
    #allocation4 [shape = 's32[1]{0}', space=sflag, size = 0x4, scoped, tag = 'scoped memory for tpu_custom_call.1']
    #allocation5 [shape = 'u8[49152]{0}', space=vmem, size = 0xc000, scoped, tag = 'input window, operand 1, single buffered']
    #allocation6 [shape = 's32[1]{0}', space=sflag, size = 0x4, scoped, tag = 'scoped memory for tpu_custom_call.1']
    #allocation7 [shape = 'u8[2048]{0}', space=vmem, size = 0x800, scoped, tag = 'input window, operand 2, single buffered']
    #allocation8 [shape = 'u8[16384]{0}', space=vmem, size = 0x4000, scoped, tag = 'output window, operand 0, single buffered']
    %8 = vsyncpa [#allocation3], 0
    %9 = vsyncpa [#allocation6], 0
    %10 = vsyncpa [#allocation4], 0
    // Predicated region
    $region2: #{tpu_custom_call.1} parent=1 // pred_check
      _
    $region3: #{tpu_custom_call.1} parent=1 // pred_check_branch
      %12 = sbr.rel (0) target = $region5
    $region4: #{tpu_custom_call.1} parent=1 // pred_region
      %14 = vsyncadd [#allocation3], 0
      %s15 = sshll.u32 %s0, 4
      %s16 = int_to_ptr.hbm [resolvable:$true] %s15
      %s17 = sshll.u32 [#allocation2], 4
      %s18 = int_to_ptr.vmem [resolvable:$true] %s17
      %23 = dma.hbm_to_vmem [thread:$0]  %s16, 128, %s18, [#allocation3], 64, 64, 4
    $region5: #{tpu_custom_call.1} parent=1 // pred_fallthru
      _
    // Predicated region
    $region6: #{tpu_custom_call.1} parent=1 // pred_check
      _
    $region7: #{tpu_custom_call.1} parent=1 // pred_check_branch
      %25 = sbr.rel (0) target = $region9
    $region8: #{tpu_custom_call.1} parent=1 // pred_region
      %27 = vsyncadd [#allocation6], 0
      %s28 = sshll.u32 %s1, 4
      %s29 = int_to_ptr.hbm [resolvable:$true] %s28
      %s30 = sshll.u32 [#allocation5], 4
      %s31 = int_to_ptr.vmem [resolvable:$true] %s30
      %36 = dma.hbm_to_vmem [thread:$0]  %s29, 1536, %s31, [#allocation6], 256, 256, 16
    $region9: #{tpu_custom_call.1} parent=1 // pred_fallthru
      _
    // Predicated region
    $region10: #{tpu_custom_call.1} parent=1 // pred_check
      _
    $region11: #{tpu_custom_call.1} parent=1 // pred_check_branch
      %38 = sbr.rel (0) target = $region13
    $region12: #{tpu_custom_call.1} parent=1 // pred_region
      %40 = vsyncadd [#allocation6], 0
      %s42 = sshll.u32 %s2, 4
      %s43 = int_to_ptr.hbm [resolvable:$true] %s42
      %s44 = sshll.u32 [#allocation7], 4
      %s45 = int_to_ptr.vmem [resolvable:$true] %s44
      %47 = dma.hbm_to_vmem [thread:$0]  %s43, 64, %s45, [#allocation6]
    $region13: #{tpu_custom_call.1} parent=1 // pred_fallthru
      _
    // Predicated region
    $region14: #{tpu_custom_call.1} parent=1 // pred_check
      _
    $region15: #{tpu_custom_call.1} parent=1 // pred_check_branch
      %49 = sbr.rel (0) target = $region17
    $region16: #{tpu_custom_call.1} parent=1 // pred_region
      %51 = dma.done [#allocation3], 128
    $region17: #{tpu_custom_call.1} parent=1 // pred_fallthru
      _
    // Predicated region
    $region18: #{tpu_custom_call.1} parent=1 // pred_check
      _
    $region19: #{tpu_custom_call.1} parent=1 // pred_check_branch
      %53 = sbr.rel (0) target = $region21
    $region20: #{tpu_custom_call.1} parent=1 // pred_region
      %55 = dma.done [#allocation6], 1536
    $region21: #{tpu_custom_call.1} parent=1 // pred_fallthru
      _
    // Predicated region
    $region22: #{tpu_custom_call.1} parent=1 // pred_check
      _
    $region23: #{tpu_custom_call.1} parent=1 // pred_check_branch
      %57 = sbr.rel (0) target = $region25
    $region24: #{tpu_custom_call.1} parent=1 // pred_region
      %59 = dma.done [#allocation6], 64
    $region25: #{tpu_custom_call.1} parent=1 // pred_fallthru
      _
    %v61 = vld [vmem:[#allocation2] sm:$0xf]
    %v62 = vld [vmem:[#allocation2 + $0x4] sm:$0xf]
    %v63 = vld [vmem:[#allocation5] sm:$0xff]
    %v64 = vld [vmem:[#allocation5 + $0x8] sm:$0xff]
    %v65 = vld [vmem:[#allocation5 + $0x10] sm:$0xff]
    %v66 = vld [vmem:[#allocation5 + $0x18] sm:$0xff]
    %v67 = vld [vmem:[#allocation5 + $0x20] sm:$0xff]
    %v68 = vld [vmem:[#allocation5 + $0x28] sm:$0xff]
    %v69 = vld [vmem:[#allocation5 + $0x30] sm:$0xff]
    %v70 = vld [vmem:[#allocation5 + $0x38] sm:$0xff]
    %v71 = vld [vmem:[#allocation5 + $0x40] sm:$0xff]
    %v72 = vld [vmem:[#allocation5 + $0x48] sm:$0xff]
    %v73 = vld [vmem:[#allocation5 + $0x50] sm:$0x11]
    %v74 = vld [vmem:[#allocation5 + $0x58] sm:$0x11]
    %v75 = vld [vmem:[#allocation7] sm:$0xf]
    %v77 = vperm.slane %v75, 0
    %v78 = vperm.slane %v75, 1
    %v79 = vperm.slane %v75, 2
    %v80 = vperm.slane %v75, 3
    %v87 = vunpack.c.l.b16 %v61
    %v88 = vunpack.c.l.b16 %v62
    %v89 = vpack.c.b16 %v88, %v87
    %v102 = vunpack.c.l.b16 %v63
    %v103 = vunpack.c.h.b16 %v63
    %v104 = vunpack.c.l.b16 %v64
    %v105 = vunpack.c.h.b16 %v64
    %v106 = vunpack.c.l.b16 %v65
    %v107 = vunpack.c.h.b16 %v65
    %v108 = vunpack.c.l.b16 %v66
    %v109 = vunpack.c.h.b16 %v66
    %v110 = vunpack.c.l.b16 %v67
    %v111 = vunpack.c.h.b16 %v67
    %v112 = vunpack.c.l.b16 %v68
    %v113 = vunpack.c.h.b16 %v68
    %v114 = vunpack.c.l.b16 %v69
    %v115 = vunpack.c.h.b16 %v69
    %v116 = vunpack.c.l.b16 %v70
    %v117 = vunpack.c.h.b16 %v70
    %v118 = vunpack.c.l.b16 %v71
    %v119 = vunpack.c.h.b16 %v71
    %v120 = vunpack.c.l.b16 %v72
    %v121 = vunpack.c.h.b16 %v72
    %v122 = vunpack.c.l.b16 %v73
    %v123 = vunpack.c.h.b16 %v73
    %v124 = vunpack.c.l.b16 %v74
    %v125 = vunpack.c.h.b16 %v74
    %v126 = vpack.c.b16 %v106, %v102
    %v127 = vpack.c.b16 %v107, %v103
    %v128 = vpack.c.b16 %v108, %v104
    %v129 = vpack.c.b16 %v109, %v105
    %v130 = vpack.c.b16 %v114, %v110
    %v131 = vpack.c.b16 %v115, %v111
    %v132 = vpack.c.b16 %v116, %v112
    %v133 = vpack.c.b16 %v117, %v113
    %v134 = vpack.c.b16 %v122, %v118
    %v135 = vpack.c.b16 %v123, %v119
    %v136 = vpack.c.b16 %v124, %v120
    %v137 = vpack.c.b16 %v125, %v121
    %vm146 = vcmask 343040
    %v148 = vsel %vm146, %v89, 0
    %vm150 = vcmask 1044480
    %v152 = vsel %vm150, %v134, 0
    %v155 = vsel %vm150, %v135, 0
    %v158 = vsel %vm150, %v136, 0
    %v161 = vsel %vm150, %v137, 0
    %163 = vmatpush.bf16.msra.mxu0 0
    %164 = vmatpush.bf16.msra.mxu0 0
    %165 = vmatpush.bf16.msra.mxu0 0
    %166 = vmatpush.bf16.msra.mxu0 0
    %167 = vmatpush.bf16.msra.mxu0 0
    %168 = vmatpush.bf16.msra.mxu0 %v152
    %169 = vmatpush.bf16.msra.mxu0 %v130
    %170 = vmatpush.bf16.msra.mxu0 %v126
    %171 = vmatmul.bf16.gmra.mxu0 %v148
    %v172 = vpop.f32.mrf.mxu0
    %v173 = vadd.f32 %v77, %v172
    %v174 = vpop.f32.mrf.mxu0
    %v175 = vadd.f32 %v77, %v174
    %176 = vdwg.mxu0
    %177 = vmatpush.bf16.msra.mxu0 0
    %178 = vmatpush.bf16.msra.mxu0 0
    %179 = vmatpush.bf16.msra.mxu0 0
    %180 = vmatpush.bf16.msra.mxu0 0
    %181 = vmatpush.bf16.msra.mxu0 0
    %182 = vmatpush.bf16.msra.mxu0 %v155
    %183 = vmatpush.bf16.msra.mxu0 %v131
    %184 = vmatpush.bf16.msra.mxu0 %v127
    %185 = vmatmul.bf16.gmra.mxu0 %v148
    %v186 = vpop.f32.mrf.mxu0
    %v187 = vadd.f32 %v78, %v186
    %v188 = vpop.f32.mrf.mxu0
    %v189 = vadd.f32 %v78, %v188
    %190 = vdwg.mxu0
    %191 = vmatpush.bf16.msra.mxu0 0
    %192 = vmatpush.bf16.msra.mxu0 0
    %193 = vmatpush.bf16.msra.mxu0 0
    %194 = vmatpush.bf16.msra.mxu0 0
    %195 = vmatpush.bf16.msra.mxu0 0
    %196 = vmatpush.bf16.msra.mxu0 %v158
    %197 = vmatpush.bf16.msra.mxu0 %v132
    %198 = vmatpush.bf16.msra.mxu0 %v128
    %199 = vmatmul.bf16.gmra.mxu0 %v148
    %v200 = vpop.f32.mrf.mxu0
    %v201 = vadd.f32 %v79, %v200
    %v202 = vpop.f32.mrf.mxu0
    %v203 = vadd.f32 %v79, %v202
    %204 = vdwg.mxu0
    %205 = vmatpush.bf16.msra.mxu0 0
    %206 = vmatpush.bf16.msra.mxu0 0
    %207 = vmatpush.bf16.msra.mxu0 0
    %208 = vmatpush.bf16.msra.mxu0 0
    %209 = vmatpush.bf16.msra.mxu0 0
    %210 = vmatpush.bf16.msra.mxu0 %v161
    %211 = vmatpush.bf16.msra.mxu0 %v133
    %212 = vmatpush.bf16.msra.mxu0 %v129
    %213 = vmatmul.bf16.gmra.mxu0 %v148
    %v214 = vpop.f32.mrf.mxu0
    %v215 = vadd.f32 %v80, %v214
    %v216 = vpop.f32.mrf.mxu0
    %v217 = vadd.f32 %v80, %v216
    %218 = vdwg.mxu0
    %v219 = vpack.c.bf16 %v187, %v173
    %v220 = vpack.c.bf16 %v215, %v201
    %v221 = vpack.c.bf16 %v189, %v175
    %v222 = vpack.c.bf16 %v217, %v203
    %223 = vst [vmem:[#allocation8] sm:$0xff] %v219
    %224 = vst [vmem:[#allocation8 + $0x8] sm:$0xff] %v220
    %225 = vst [vmem:[#allocation8 + $0x10] sm:$0xff] %v221
    %226 = vst [vmem:[#allocation8 + $0x18] sm:$0xff] %v222
    // Predicated region
    $region26: #{tpu_custom_call.1} parent=1 // pred_check
      _
    $region27: #{tpu_custom_call.1} parent=1 // pred_check_branch
      %228 = sbr.rel (0) target = $region29
    $region28: #{tpu_custom_call.1} parent=1 // pred_region
      %230 = vsyncadd [#allocation4], 0
      %s231 = sshll.u32 [#allocation8], 4
      %s232 = int_to_ptr.vmem [resolvable:$true] %s231
      %s233 = sshll.u32 %s3, 4
      %s234 = int_to_ptr.hbm [resolvable:$true] %s233
      %239 = dma.vmem_to_hbm [thread:$0]  %s232, 512, %s234, [#allocation4], 256, 256, 16
    $region29: #{tpu_custom_call.1} parent=1 // pred_fallthru
      _
    // Predicated region
    $region30: #{tpu_custom_call.1} parent=1 // pred_check
      _
    $region31: #{tpu_custom_call.1} parent=1 // pred_check_branch
      %241 = sbr.rel (0) target = $region33
    $region32: #{tpu_custom_call.1} parent=1 // pred_region
      %243 = dma.done [#allocation4], 512
    $region33: #{tpu_custom_call.1} parent=1 // pred_fallthru
      _
    %244 = vsyncpa [#allocation3], 1
    %245 = vsyncpa [#allocation6], 1
    %246 = vsyncpa [#allocation4], 1

</llo_original>
